<compile_context>
chip_gen: v7x
topology: tpu7x:2x2x1
jax: 0.10.0
libtpu: 0.0.40
codegen_flags: <defaults>
</compile_context>

<pallas_src>
import numpy as np
import jax
import jax.numpy as jnp
from jax import lax
from jax.experimental import pallas as pl
from jax.experimental.pallas import tpu as pltpu

_PAD_VAL = 1.0e9  # lane-padding constant (same value for tf & target)


# ----------------------------- Pallas kernel -------------------------------
def _make_adds_kernel(b_tile, num_p, p_pad, qc, rc):
    n_qchunks = (num_p + qc - 1) // qc          # only chunks containing real rows
    n_rchunks = p_pad // rc
    inv_num_p = 1.0 / float(num_p)
    need_q_mask = (n_qchunks * qc) > num_p      # pad rows inside the last q-chunk

    def kernel(sym_ref,      # SMEM (BS_pad,) int32   : 1 if idx[b] in sym_list
               tf_ref,       # VMEM (b_tile, 3, P_pad): transformed model points
               tgt_ref,      # VMEM (b_tile, 3, P_pad): target points
               out_ref,      # VMEM (b_tile, 128)     : per-batch loss (lane-broadcast)
               tf8_scr,      # VMEM (8, P_pad)        : tf rows staged for transpose
               tfT_scr,      # VMEM (P_pad, 8)        : tf points as (P, 8)
               tgt_scr,      # VMEM (3, P_pad)        : target staged for static reads
               tmp_scr):     # VMEM (1, 128)          : loss of the current batch
        b0 = pl.program_id(0) * b_tile
        rows_b = lax.broadcasted_iota(jnp.int32, (b_tile, 128), 0)   # hoisted
        q_rows = lax.broadcasted_iota(jnp.int32, (qc, 1), 0)         # hoisted

        def batch_body(ib, out_acc):
            is_sym = sym_ref[b0 + ib] != 0

            # ---------- non-symmetric: mean_q ||tf[q] - tgt[q]|| ------------
            @pl.when(jnp.logical_not(is_sym))
            def _():
                tf_b = tf_ref[ib]                       # (3, P_pad)
                tgt_b = tgt_ref[ib]                     # (3, P_pad)
                dx = tf_b[0:1, :] - tgt_b[0:1, :]
                d2 = dx * dx
                dy = tf_b[1:2, :] - tgt_b[1:2, :]
                d2 = d2 + dy * dy
                dz = tf_b[2:3, :] - tgt_b[2:3, :]
                d2 = d2 + dz * dz                       # pad lanes are exactly 0
                loss = jnp.sum(jnp.sqrt(d2)) * inv_num_p
                tmp_scr[...] = jnp.full((1, 128), loss, jnp.float32)

            # ---------- symmetric: mean_q min_r ||tf[q] - tgt[r]|| ----------
            @pl.when(is_sym)
            def _():
                # Stage this batch once (O(P) cost vs O(P^2) compute) so the
                # hot loops below use static-pattern scratch reads only.
                tf8_scr[0:3, :] = tf_ref[ib]            # rows 3..7 never read
                tfT_scr[...] = tf8_scr[...].T           # (P_pad, 8), cols 3..7 unused
                tgt_scr[...] = tgt_ref[ib]              # (3, P_pad)

                def q_body(qi, acc):
                    q0 = pl.multiple_of(qi * qc, qc)
                    tfc = tfT_scr[pl.ds(q0, qc), :]     # (qc, 8)
                    # hoist the lane broadcasts of q coords out of the r-loop
                    qxb = jnp.broadcast_to(tfc[:, 0:1], (qc, rc))
                    qyb = jnp.broadcast_to(tfc[:, 1:2], (qc, rc))
                    qzb = jnp.broadcast_to(tfc[:, 2:3], (qc, rc))

                    def r_body(ri, dmin):
                        r0 = pl.multiple_of(ri * rc, rc)
                        tx = tgt_scr[0:1, pl.ds(r0, rc)]    # (1, rc)
                        ty = tgt_scr[1:2, pl.ds(r0, rc)]
                        tz = tgt_scr[2:3, pl.ds(r0, rc)]
                        dx = qxb - tx                        # (qc, rc)  pure VPU
                        d2 = dx * dx
                        dy = qyb - ty
                        d2 = d2 + dy * dy
                        dz = qzb - tz
                        d2 = d2 + dz * dz
                        return jnp.minimum(
                            dmin, jnp.min(d2, axis=1, keepdims=True))

                    dmin = lax.fori_loop(
                        0, n_rchunks, r_body,
                        jnp.full((qc, 1), jnp.inf, jnp.float32))
                    dmin = jnp.maximum(dmin, 0.0)       # guard before sqrt
                    dist = jnp.sqrt(dmin)               # (qc, 1)
                    if need_q_mask:
                        dist = jnp.where((q0 + q_rows) < num_p, dist, 0.0)
                    return acc + jnp.sum(dist)

                total = lax.fori_loop(0, n_qchunks, q_body, jnp.float32(0.0))
                tmp_scr[...] = jnp.full((1, 128), total * inv_num_p, jnp.float32)

            # merge this batch's loss row into the carry (one dense store later)
            row = tmp_scr[...]                          # (1, 128)
            sel = rows_b == ib
            return jnp.where(sel, jnp.broadcast_to(row, (b_tile, 128)), out_acc)

        out_acc = lax.fori_loop(0, b_tile, batch_body,
                                jnp.zeros((b_tile, 128), jnp.float32))
        out_ref[...] = out_acc                          # single unmasked store

    return kernel


def _round_up(x, m):
    return ((x + m - 1) // m) * m


def _adds_pallas(sym_flags, tf_cp, tgt_cp):
    """sym_flags: (BS,) int32; tf_cp, tgt_cp: (BS, 3, P) float32 -> (BS,) loss."""
    bs, _, num_p = tgt_cp.shape

    # ---- explicit lane padding to a multiple of 128.  Both tensors get the
    #      SAME constant: non-symmetric diff is exactly 0 on pad lanes and a
    #      pad target is never the nearest neighbour of a real point. ----
    p_pad = _round_up(num_p, 128)
    if p_pad != num_p:
        lane_pad = jnp.full((bs, 3, p_pad - num_p), _PAD_VAL, jnp.float32)
        tf_cp = jnp.concatenate([tf_cp, lane_pad], axis=2)
        tgt_cp = jnp.concatenate([tgt_cp, lane_pad], axis=2)

    # ---- batch blocking (amortize per-step overhead, >=2 blocks when
    #      possible so both v7x TensorCores get work) ----
    if bs >= 16:
        b_tile = 8
    else:
        b_tile = max(1, (bs + 1) // 2)
    n_blocks = (bs + b_tile - 1) // b_tile
    bs_pad = n_blocks * b_tile
    if bs_pad != bs:
        pad = bs_pad - bs
        zpad = jnp.zeros((pad, 3, p_pad), jnp.float32)
        tf_cp = jnp.concatenate([tf_cp, zpad], axis=0)
        tgt_cp = jnp.concatenate([tgt_cp, zpad], axis=0)
        sym_flags = jnp.concatenate([sym_flags, jnp.zeros((pad,), jnp.int32)], 0)

    # ---- round-robin load balancing of symmetric (O(P^2)) batches over grid
    #      blocks; output is un-permuted below ----
    if n_blocks > 1:
        order = jnp.argsort(-sym_flags)                       # symmetric first
        j = jnp.arange(bs_pad)
        slots = (j % n_blocks) * b_tile + (j // n_blocks)     # deal round-robin
        perm = jnp.zeros((bs_pad,), jnp.int32).at[slots].set(order.astype(jnp.int32))
        inv = jnp.zeros((bs_pad,), jnp.int32).at[perm].set(
            jnp.arange(bs_pad, dtype=jnp.int32))
        tf_cp = tf_cp[perm]
        tgt_cp = tgt_cp[perm]
        sym_flags = sym_flags[perm]
    else:
        inv = None

    # symmetric-path tile: qc*rc = 4096 f32 (~4 vregs live), works on v5e-v7x
    qc, rc = 32, 128

    kernel = _make_adds_kernel(b_tile, num_p, p_pad, qc, rc)

    cost = pl.CostEstimate(
        flops=int(9 * num_p * p_pad * bs_pad),          # worst case: all symmetric
        transcendentals=0,
        bytes_accessed=int(4 * bs_pad * (6 * p_pad + 128) + 4 * bs_pad))

    out = pl.pallas_call(
        kernel,
        out_shape=jax.ShapeDtypeStruct((n_blocks, b_tile, 128), jnp.float32),
        grid_spec=pltpu.PrefetchScalarGridSpec(
            num_scalar_prefetch=1,
            grid=(n_blocks,),
            in_specs=[
                pl.BlockSpec((b_tile, 3, p_pad), lambda b, sym: (b, 0, 0)),
                pl.BlockSpec((b_tile, 3, p_pad), lambda b, sym: (b, 0, 0)),
            ],
            out_specs=pl.BlockSpec((None, b_tile, 128), lambda b, sym: (b, 0, 0)),
            scratch_shapes=[
                pltpu.VMEM((8, p_pad), jnp.float32),    # tf staged to 8 sublanes
                pltpu.VMEM((p_pad, 8), jnp.float32),    # transposed tf points
                pltpu.VMEM((3, p_pad), jnp.float32),    # target staging
                pltpu.VMEM((1, 128), jnp.float32),      # per-batch loss row
            ]),
        compiler_params=pltpu.CompilerParams(
            dimension_semantics=("parallel",)),
        cost_estimate=cost,
    )(sym_flags, tf_cp, tgt_cp)

    flat = out.reshape(bs_pad, 128)[:, 0]
    if inv is not None:
        flat = flat[inv]                                 # undo the load-balance permutation
    return flat[:bs]


# ------------------------------- glue (JAX) ---------------------------------
def _quat_to_rot_wxyz(q):
    """q: (BS, 4) normalized 'wxyz' -> (BS, 3, 3) rotation matrices."""
    w, x, y, z = q[:, 0], q[:, 1], q[:, 2], q[:, 3]
    R = jnp.stack([
        jnp.stack([1 - 2 * (y * y + z * z), 2 * (x * y - z * w), 2 * (x * z + y * w)], -1),
        jnp.stack([2 * (x * y + z * w), 1 - 2 * (x * x + z * z), 2 * (y * z - x * w)], -1),
        jnp.stack([2 * (x * z - y * w), 2 * (y * z + x * w), 1 - 2 * (x * x + y * y)], -1),
    ], axis=1)
    return R


def adds_loss(target, model_points, idx, sym_list, pred_r=None, pred_t=None, H=None):
    """Mirror of AddSLoss.forward. Returns per-batch distance, shape (BS,)."""
    bs = target.shape[0]
    target = jnp.asarray(target, jnp.float32)
    model_points = jnp.asarray(model_points, jnp.float32)

    if H is not None:
        base = jnp.transpose(H[:, :3, :3], (0, 2, 1)).astype(jnp.float32)   # R^T
        t = H[:, :3, 3].astype(jnp.float32)                                 # (BS, 3)
    else:
        # TODO(synk): quat_to_rot was not provided in the source; a standard
        # 'wxyz' quaternion -> rotation conversion is assumed here.
        pred_r = pred_r / jnp.linalg.norm(pred_r, axis=1, keepdims=True)
        base = jnp.transpose(_quat_to_rot_wxyz(pred_r), (0, 2, 1)).astype(jnp.float32)
        t = jnp.asarray(pred_t, jnp.float32)

    # transformed model points, produced DIRECTLY in lane-dense (BS, 3, P)
    # layout (no extra relayout pass over tf in the wrapper)
    tf_cp = jnp.einsum('bpd,bde->bep', model_points, base) + t[:, :, None]
    tgt_cp = jnp.transpose(target, (0, 2, 1))                               # (BS, 3, P)

    # jittable symmetric-class flags
    idx0 = jnp.asarray(idx).reshape(bs, -1)[:, 0]
    if len(sym_list) == 0:
        sym_flags = jnp.zeros((bs,), jnp.int32)
    else:
        sym_arr = jnp.asarray(list(sym_list), dtype=idx0.dtype)
        sym_flags = jnp.any(idx0[:, None] == sym_arr[None, :], axis=1).astype(jnp.int32)

    return _adds_pallas(sym_flags, tf_cp, tgt_cp)


# ---------------------------- pure-JAX reference -----------------------------
def _adds_reference(target, model_points, idx, sym_list, H):
    base = jnp.transpose(H[:, :3, :3], (0, 2, 1))
    t = H[:, :3, 3][:, None, :]
    tf = jnp.einsum('bpd,bde->bpe', model_points, base) + t
    idx_np = np.asarray(idx)
    out = []
    for i in range(target.shape[0]):
        if int(idx_np[i, 0]) in sym_list:
            d = jnp.sqrt(jnp.sum((tf[i][:, None, :] - target[i][None, :, :]) ** 2, -1))
            out.append(jnp.mean(jnp.min(d, axis=1)))
        else:
            out.append(jnp.mean(jnp.linalg.norm(tf[i] - target[i], axis=1)))
    return jnp.stack(out)


# ---------------------------------- main -------------------------------------
if __name__ == "__main__":
    key = jax.random.PRNGKey(0)
    bs, num_p = 4, 128
    sym_list = [3]                                   # object class 3 is symmetric

    k1, k2, k3, k4 = jax.random.split(key, 4)
    model_points = jax.random.normal(k1, (bs, num_p, 3), dtype=jnp.float32)

    # deterministic per-batch rigid transform packed into H (BS, 4, 4)
    q = jax.random.normal(k2, (bs, 4), dtype=jnp.float32)
    q = q / jnp.linalg.norm(q, axis=1, keepdims=True)
    R = _quat_to_rot_wxyz(q)                         # (BS, 3, 3)
    trans = 0.1 * jax.random.normal(k3, (bs, 3), dtype=jnp.float32)
    H = jnp.tile(jnp.eye(4, dtype=jnp.float32)[None], (bs, 1, 1))
    H = H.at[:, :3, :3].set(R).at[:, :3, 3].set(trans)

    # target: a (noisy) transformed copy of the model points
    target = jnp.einsum('bpd,bed->bpe', model_points, R) + trans[:, None, :]
    target = target + 0.05 * jax.random.normal(k4, (bs, num_p, 3), dtype=jnp.float32)

    # mix of non-symmetric (0, 1) and symmetric (3) object classes
    idx = jnp.array([[0], [3], [3], [1]], dtype=jnp.int32)

    dis = adds_loss(target, model_points, idx, sym_list, H=H)
    dis = jax.block_until_ready(dis)

    ref = _adds_reference(target, model_points, idx, sym_list, H)
    np.testing.assert_allclose(np.asarray(dis), np.asarray(ref), rtol=1e-4, atol=1e-4)

    print("KERNEL_OK")
</pallas_src>

<mosaic_0001>
module attributes {stable_mosaic.version = 11 : i64} {
  func.func @kernel(%arg0: i32, %arg1: memref<4xi32, #tpu.memory_space<smem>>, %arg2: memref<2x3x128xf32, #tpu.memory_space<vmem>>, %arg3: memref<2x3x128xf32, #tpu.memory_space<vmem>>, %arg4: memref<1x2x128xf32, #tpu.memory_space<vmem>>, %arg5: memref<8x128xf32, #tpu.memory_space<vmem>>, %arg6: memref<128x8xf32, #tpu.memory_space<vmem>>, %arg7: memref<3x128xf32, #tpu.memory_space<vmem>>, %arg8: memref<1x128xf32, #tpu.memory_space<vmem>>) attributes {dimension_semantics = [#tpu.dimension_semantics<parallel>], iteration_bounds = array<i64: 2>, scalar_prefetch = 1 : i64, scratch_operands = 4 : i64, tpu.core_type = #tpu.core_type<tc>, window_params = [{transform_indices = @transform_0, window_bounds = array<i64: 2, 3, 128>}, {transform_indices = @transform_1, window_bounds = array<i64: 2, 3, 128>}, {transform_indices = @transform_2, window_bounds = array<i64: 1, 2, 128>}]} {
    %c2_i32 = arith.constant 2 : i32
    %0 = arith.muli %arg0, %c2_i32 : i32
    %1 = tpu.iota {dimensions = array<i32: 0>} : vector<2x128xi32>
    %cst = arith.constant 0.000000e+00 : f32
    %2 = vector.broadcast %cst : f32 to vector<2x128xf32>
    %c0_i32 = arith.constant 0 : i32
    %c2_i32_0 = arith.constant 2 : i32
    %3 = arith.addi %c0_i32, %c2_i32_0 : i32
    %c1_i32 = arith.constant 1 : i32
    %4 = scf.for %arg9 = %c0_i32 to %3 step %c1_i32 iter_args(%arg10 = %2) -> (vector<2x128xf32>)  : i32 {
      %8 = arith.addi %0, %arg9 : i32
      %9 = arith.index_cast %8 : i32 to index
      %10 = memref.load %arg1[%9] : memref<4xi32, #tpu.memory_space<smem>>
      %c0_i32_4 = arith.constant 0 : i32
      %11 = arith.cmpi ne, %10, %c0_i32_4 : i32
      %true = arith.constant true
      %12 = arith.xori %11, %true : i1
      %13 = arith.extui %12 : i1 to i32
      %c0_i32_5 = arith.constant 0 : i32
      %14 = arith.cmpi ne, %13, %c0_i32_5 : i32
      scf.if %14 {
        %23 = arith.index_cast %arg9 : i32 to index
        %c0_9 = arith.constant 0 : index
        %c0_10 = arith.constant 0 : index
        %24 = vector.load %arg2[%23, %c0_9, %c0_10] : memref<2x3x128xf32, #tpu.memory_space<vmem>>, vector<1x3x128xf32>
        %25 = vector.shape_cast %24 : vector<1x3x128xf32> to vector<3x128xf32>
        %26 = arith.index_cast %arg9 : i32 to index
        %c0_11 = arith.constant 0 : index
        %c0_12 = arith.constant 0 : index
        %27 = vector.load %arg3[%26, %c0_11, %c0_12] : memref<2x3x128xf32, #tpu.memory_space<vmem>>, vector<1x3x128xf32>
        %28 = vector.shape_cast %27 : vector<1x3x128xf32> to vector<3x128xf32>
        %29 = vector.extract_strided_slice %25 {offsets = [0, 0], sizes = [1, 128], strides = [1, 1]} : vector<3x128xf32> to vector<1x128xf32>
        %30 = vector.extract_strided_slice %28 {offsets = [0, 0], sizes = [1, 128], strides = [1, 1]} : vector<3x128xf32> to vector<1x128xf32>
        %31 = arith.subf %29, %30 : vector<1x128xf32>
        %32 = arith.mulf %31, %31 : vector<1x128xf32>
        %33 = vector.extract_strided_slice %25 {offsets = [1, 0], sizes = [1, 128], strides = [1, 1]} : vector<3x128xf32> to vector<1x128xf32>
        %34 = vector.extract_strided_slice %28 {offsets = [1, 0], sizes = [1, 128], strides = [1, 1]} : vector<3x128xf32> to vector<1x128xf32>
        %35 = arith.subf %33, %34 : vector<1x128xf32>
        %36 = arith.mulf %35, %35 : vector<1x128xf32>
        %37 = arith.addf %32, %36 : vector<1x128xf32>
        %38 = vector.extract_strided_slice %25 {offsets = [2, 0], sizes = [1, 128], strides = [1, 1]} : vector<3x128xf32> to vector<1x128xf32>
        %39 = vector.extract_strided_slice %28 {offsets = [2, 0], sizes = [1, 128], strides = [1, 1]} : vector<3x128xf32> to vector<1x128xf32>
        %40 = arith.subf %38, %39 : vector<1x128xf32>
        %41 = arith.mulf %40, %40 : vector<1x128xf32>
        %42 = arith.addf %37, %41 : vector<1x128xf32>
        %43 = math.sqrt %42 : vector<1x128xf32>
        %44 = vector.shape_cast %43 : vector<1x128xf32> to vector<1x1x128xf32>
        %cst_13 = arith.constant dense<0.000000e+00> : vector<1xf32>
        %45 = vector.multi_reduction <add>, %44, %cst_13 [1, 2] : vector<1x1x128xf32> to vector<1xf32>
        %46 = vector.shape_cast %45 : vector<1xf32> to vector<1x1x1xf32>
        %47 = vector.extract %46[0, 0, 0] : f32 from vector<1x1x1xf32>
        %cst_14 = arith.constant 7.812500e-03 : f32
        %48 = arith.mulf %47, %cst_14 : f32
        %49 = vector.broadcast %48 : f32 to vector<1x128xf32>
        %c0_15 = arith.constant 0 : index
        %c0_16 = arith.constant 0 : index
        %50 = vector.load %arg8[%c0_15, %c0_16] : memref<1x128xf32, #tpu.memory_space<vmem>>, vector<1x128xf32>
        tpu.vector_store %arg8[%c0_15, %c0_16], %49 {strides = array<i32>} : memref<1x128xf32, #tpu.memory_space<vmem>>, vector<1x128xf32>,
      } else {
      }
      %15 = arith.extui %11 : i1 to i32
      %c0_i32_6 = arith.constant 0 : i32
      %16 = arith.cmpi ne, %15, %c0_i32_6 : i32
      scf.if %16 {
        %23 = arith.index_cast %arg9 : i32 to index
        %c0_9 = arith.constant 0 : index
        %c0_10 = arith.constant 0 : index
        %24 = vector.load %arg2[%23, %c0_9, %c0_10] : memref<2x3x128xf32, #tpu.memory_space<vmem>>, vector<1x3x128xf32>
        %25 = vector.shape_cast %24 : vector<1x3x128xf32> to vector<3x128xf32>
        %c0_11 = arith.constant 0 : index
        %c0_12 = arith.constant 0 : index
        %26 = vector.load %arg5[%c0_11, %c0_12] : memref<8x128xf32, #tpu.memory_space<vmem>>, vector<3x128xf32>
        tpu.vector_store %arg5[%c0_11, %c0_12], %25 {strides = array<i32>} : memref<8x128xf32, #tpu.memory_space<vmem>>, vector<3x128xf32>,
        %c0_13 = arith.constant 0 : index
        %c0_14 = arith.constant 0 : index
        %27 = vector.load %arg5[%c0_13, %c0_14] : memref<8x128xf32, #tpu.memory_space<vmem>>, vector<8x128xf32>
        %28 = tpu.transpose %27, [1, 0] : vector<8x128xf32> -> vector<128x8xf32>
        %c0_15 = arith.constant 0 : index
        %c0_16 = arith.constant 0 : index
        %29 = vector.load %arg6[%c0_15, %c0_16] : memref<128x8xf32, #tpu.memory_space<vmem>>, vector<128x8xf32>
        tpu.vector_store %arg6[%c0_15, %c0_16], %28 {strides = array<i32>} : memref<128x8xf32, #tpu.memory_space<vmem>>, vector<128x8xf32>,
        %30 = arith.index_cast %arg9 : i32 to index
        %c0_17 = arith.constant 0 : index
        %c0_18 = arith.constant 0 : index
        %31 = vector.load %arg3[%30, %c0_17, %c0_18] : memref<2x3x128xf32, #tpu.memory_space<vmem>>, vector<1x3x128xf32>
        %32 = vector.shape_cast %31 : vector<1x3x128xf32> to vector<3x128xf32>
        %c0_19 = arith.constant 0 : index
        %c0_20 = arith.constant 0 : index
        %33 = vector.load %arg7[%c0_19, %c0_20] : memref<3x128xf32, #tpu.memory_space<vmem>>, vector<3x128xf32>
        tpu.vector_store %arg7[%c0_19, %c0_20], %32 {strides = array<i32>} : memref<3x128xf32, #tpu.memory_space<vmem>>, vector<3x128xf32>,
        %cst_21 = arith.constant 0.000000e+00 : f32
        %c0_i32_22 = arith.constant 0 : i32
        %c4_i32 = arith.constant 4 : i32
        %34 = arith.addi %c0_i32_22, %c4_i32 : i32
        %c1_i32_23 = arith.constant 1 : i32
        %35 = scf.for %arg11 = %c0_i32_22 to %34 step %c1_i32_23 iter_args(%arg12 = %cst_21) -> (f32)  : i32 {
          %c32_i32 = arith.constant 32 : i32
          %39 = arith.muli %arg11, %c32_i32 : i32
          %40 = tpu.assume_multiple %39, 32 : i32
          %41 = arith.index_cast %40 : i32 to index
          %c0_28 = arith.constant 0 : index
          %42 = vector.load %arg6[%41, %c0_28] : memref<128x8xf32, #tpu.memory_space<vmem>>, vector<32x8xf32>
          %43 = vector.extract_strided_slice %42 {offsets = [0, 0], sizes = [32, 1], strides = [1, 1]} : vector<32x8xf32> to vector<32x1xf32>
          %44 = vector.shape_cast %43 : vector<32x1xf32> to vector<32x1xf32>
          %45 = vector.broadcast %44 : vector<32x1xf32> to vector<32x128xf32>
          %46 = vector.extract_strided_slice %42 {offsets = [0, 1], sizes = [32, 1], strides = [1, 1]} : vector<32x8xf32> to vector<32x1xf32>
          %47 = vector.shape_cast %46 : vector<32x1xf32> to vector<32x1xf32>
          %48 = vector.broadcast %47 : vector<32x1xf32> to vector<32x128xf32>
          %49 = vector.extract_strided_slice %42 {offsets = [0, 2], sizes = [32, 1], strides = [1, 1]} : vector<32x8xf32> to vector<32x1xf32>
          %50 = vector.shape_cast %49 : vector<32x1xf32> to vector<32x1xf32>
          %51 = vector.broadcast %50 : vector<32x1xf32> to vector<32x128xf32>
          %cst_29 = arith.constant 0x7F800000 : f32
          %52 = vector.broadcast %cst_29 : f32 to vector<32x1xf32>
          %c0_i32_30 = arith.constant 0 : i32
          %c128_i32 = arith.constant 128 : i32
          %53 = arith.muli %c0_i32_30, %c128_i32 : i32
          %54 = tpu.assume_multiple %53, 128 : i32
          %c0_31 = arith.constant 0 : index
          %55 = arith.index_cast %54 : i32 to index
          %56 = vector.load %arg7[%c0_31, %55] : memref<3x128xf32, #tpu.memory_space<vmem>>, vector<1x128xf32>
          %c1 = arith.constant 1 : index
          %57 = arith.index_cast %54 : i32 to index
          %58 = vector.load %arg7[%c1, %57] : memref<3x128xf32, #tpu.memory_space<vmem>>, vector<1x128xf32>
          %c2 = arith.constant 2 : index
          %59 = arith.index_cast %54 : i32 to index
          %60 = vector.load %arg7[%c2, %59] : memref<3x128xf32, #tpu.memory_space<vmem>>, vector<1x128xf32>
          %61 = vector.broadcast %56 : vector<1x128xf32> to vector<32x128xf32>
          %62 = arith.subf %45, %61 : vector<32x128xf32>
          %63 = arith.mulf %62, %62 : vector<32x128xf32>
          %64 = vector.broadcast %58 : vector<1x128xf32> to vector<32x128xf32>
          %65 = arith.subf %48, %64 : vector<32x128xf32>
          %66 = arith.mulf %65, %65 : vector<32x128xf32>
          %67 = arith.addf %63, %66 : vector<32x128xf32>
          %68 = vector.broadcast %60 : vector<1x128xf32> to vector<32x128xf32>
          %69 = arith.subf %51, %68 : vector<32x128xf32>
          %70 = arith.mulf %69, %69 : vector<32x128xf32>
          %71 = arith.addf %67, %70 : vector<32x128xf32>
          %cst_32 = arith.constant dense<0x7F800000> : vector<32xf32>
          %72 = vector.multi_reduction <minimumf>, %71, %cst_32 [1] : vector<32x128xf32> to vector<32xf32>
          %73 = vector.shape_cast %72 : vector<32xf32> to vector<32x1xf32>
          %74 = arith.minimumf %52, %73 : vector<32x1xf32>
          %c1_i32_33 = arith.constant 1 : i32
          %cst_34 = arith.constant 0.000000e+00 : f32
          %75 = vector.broadcast %cst_34 : f32 to vector<32x1xf32>
          %76 = arith.maximumf %74, %75 : vector<32x1xf32>
          %77 = math.sqrt %76 : vector<32x1xf32>
          %78 = vector.shape_cast %77 : vector<32x1xf32> to vector<1x32x1xf32>
          %cst_35 = arith.constant dense<0.000000e+00> : vector<1xf32>
          %79 = vector.multi_reduction <add>, %78, %cst_35 [1, 2] : vector<1x32x1xf32> to vector<1xf32>
          %80 = vector.shape_cast %79 : vector<1xf32> to vector<1x1x1xf32>
          %81 = vector.extract %80[0, 0, 0] : f32 from vector<1x1x1xf32>
          %82 = arith.addf %arg12, %81 : f32
          scf.yield %82 : f32
        }
        %c4_i32_24 = arith.constant 4 : i32
        %cst_25 = arith.constant 7.812500e-03 : f32
        %36 = arith.mulf %35, %cst_25 : f32
        %37 = vector.broadcast %36 : f32 to vector<1x128xf32>
        %c0_26 = arith.constant 0 : index
        %c0_27 = arith.constant 0 : index
        %38 = vector.load %arg8[%c0_26, %c0_27] : memref<1x128xf32, #tpu.memory_space<vmem>>, vector<1x128xf32>
        tpu.vector_store %arg8[%c0_26, %c0_27], %37 {strides = array<i32>} : memref<1x128xf32, #tpu.memory_space<vmem>>, vector<1x128xf32>,
      } else {
      }
      %c0_7 = arith.constant 0 : index
      %c0_8 = arith.constant 0 : index
      %17 = vector.load %arg8[%c0_7, %c0_8] : memref<1x128xf32, #tpu.memory_space<vmem>>, vector<1x128xf32>
      %18 = vector.broadcast %arg9 : i32 to vector<2x128xi32>
      %19 = arith.cmpi eq, %1, %18 : vector<2x128xi32>
      %20 = vector.shape_cast %17 : vector<1x128xf32> to vector<1x128xf32>
      %21 = vector.broadcast %20 : vector<1x128xf32> to vector<2x128xf32>
      %22 = arith.select %19, %21, %arg10 : vector<2x128xi1>, vector<2x128xf32>
      scf.yield %22 : vector<2x128xf32>
    }
    %c2_i32_1 = arith.constant 2 : i32
    %c0 = arith.constant 0 : index
    %c0_2 = arith.constant 0 : index
    %c0_3 = arith.constant 0 : index
    %5 = vector.load %arg4[%c0, %c0_2, %c0_3] : memref<1x2x128xf32, #tpu.memory_space<vmem>>, vector<1x2x128xf32>
    %6 = vector.shape_cast %5 : vector<1x2x128xf32> to vector<2x128xf32>
    %7 = vector.shape_cast %4 : vector<2x128xf32> to vector<1x2x128xf32>
    tpu.vector_store %arg4[%c0, %c0_2, %c0_3], %7 {strides = array<i32>} : memref<1x2x128xf32, #tpu.memory_space<vmem>>, vector<1x2x128xf32>,
    return
  }
  func.func @transform_0(%arg0: i32, %arg1: memref<4xi32, #tpu.memory_space<smem>>) -> (i32, i32, i32) {
    %c0_i32 = arith.constant 0 : i32
    %c0_i32_0 = arith.constant 0 : i32
    %c0_i32_1 = arith.constant 0 : i32
    return %arg0, %c0_i32, %c0_i32_0 : i32, i32, i32
  }
  func.func @transform_1(%arg0: i32, %arg1: memref<4xi32, #tpu.memory_space<smem>>) -> (i32, i32, i32) {
    %c0_i32 = arith.constant 0 : i32
    %c0_i32_0 = arith.constant 0 : i32
    %c0_i32_1 = arith.constant 0 : i32
    return %arg0, %c0_i32, %c0_i32_0 : i32, i32, i32
  }
  func.func @transform_2(%arg0: i32, %arg1: memref<4xi32, #tpu.memory_space<smem>>) -> (i32, i32, i32) {
    %c0_i32 = arith.constant 0 : i32
    %c0_i32_0 = arith.constant 0 : i32
    %c0_i32_1 = arith.constant 0 : i32
    return %arg0, %c0_i32, %c0_i32_0 : i32, i32, i32
  }
}

</mosaic_0001>

<llo_original>
// kernel: tpu_custom_call.1
$region0: #{tpu_custom_call.1}
  #allocation0 [shape = 'u32[]', space=smem, size = 0x4, offset = 0x4, fixed_abs, tag = 'smem constant byte address 0x4 - core index']
  #allocation1 [shape = 'u32[144,128]{1,0:T(1,128)}', space=vmem, size = 0x12000, scoped, tag = 'internal scratch']
  #allocation2 [shape = 'f32[8,128]{1,0:T(8,128)}', space=vmem, size = 0x1000, scoped, tag = 'scratch operand']
  #allocation3 [shape = 'f32[128,8]{1,0:T(8,128)}', space=vmem, size = 0x10000, scoped, tag = 'scratch operand']
  #allocation4 [shape = 'f32[3,128]{1,0:T(4,128)}', space=vmem, size = 0x800, scoped, tag = 'scratch operand']
  #allocation5 [shape = 'f32[1,128]{1,0:T(1,128)}', space=vmem, size = 0x200, scoped, tag = 'scratch operand']
  #allocation6 [shape = 's32[1]{0}', space=sflag, size = 0x4, scoped, tag = 'scoped memory for tpu_custom_call.1']
  #allocation7 [shape = 'u8[512]{0}', space=smem, size = 0x200, scoped, tag = 'prefetched SMEM operand 0']
  %s0 = inlined_call_operand.vmem [shape: s32[4], index: 0, kind: input, shape index: {}]
  %s1 = inlined_call_operand.vmem [shape: f32[4,3,128], index: 1, kind: input, shape index: {}]
  %s2 = inlined_call_operand.vmem [shape: f32[4,3,128], index: 2, kind: input, shape index: {}]
  %s3 = inlined_call_operand.hbm [shape: f32[2,2,128], index: 3, kind: output, shape index: {}]
  %s4 = sld [smem:[#allocation0]]
  $region63: #{tpu_custom_call.1} parent=0
    _
  %s6 = ssub.s32 1, %s4
  %s7 = scalar_select 0, %s6, %s4
  %s8 = sshll.u32 %s0, 4
  %s9 = int_to_ptr.vmem [resolvable:$true] %s8
  %11 = dma.vmem_to_smem %s9, 16, [#allocation7], [#allocation6]
  %12 = dma.done [#allocation6], 16
  %13 = sfence
  $region1: #{tpu_custom_call.1} parent=0
    #allocation8 [shape = 'u8[2048]{0}', space=vmem, size = 0x800, scoped, tag = 'output window, operand 0']
    #allocation9 [shape = 's32[2]{0}', space=sflag, size = 0x8, scoped, tag = 'scoped memory for tpu_custom_call.1']
    %14 = vsyncpa [#allocation9], 0
    %s15 = scalar_lea.sflag [#allocation9], 1
    %16 = vsyncpa %s15, 0
    loop: start=0, step=1, limit=4
    $region2: #{tpu_custom_call.1} parent=1 // loop_pre_header
      _
    $region3: #{tpu_custom_call.1} parent=1 // loop_header
      %s18 = sphi 0, %s22
      %p19 = scmp.ge.s32.totalorder %s18, 4
      %s28 = sphi 0, %s30
      %s31 = sphi 0, %s28
      %s32 = sphi 0, %s31
      %s48 = sphi 0, %s32
      %s54 = sphi 0, %s56
      %s57 = sphi 0, %s54
      %s58 = sphi 0, %s57
      %s74 = sphi 0, %s58
      %s80 = sphi 0, %s82
      %s83 = sphi 0, %s80
      %s84 = sphi 0, %s83
      %s100 = sphi 0, %s84
    $region4: #{tpu_custom_call.1} parent=1 // loop_header_branch
      %21 = sbr.rel (%p19) target = $region8
    $region5: #{tpu_custom_call.1} parent=1 // loop_body
      %s23 = ssub.s32 %s18, 1
      %s24 = ssub.s32 %s18, 2
      %s25 = sadd.s32 %s18, 1
      %s26 = ssub.s32 %s18, %s25
      %p27 = scmp.eq.s32.totalorder %s26, 0
      %s29 = sadd.s32 %s28, 1
      %s30 = scalar_select %p27, %s28, %s29
      %p33 = pneg %p27
      %p34 = scmp.eq.s32.totalorder %s18, 1
      %p35 = por %p33, %p34
      %p36 = scmp.ne.s32.totalorder %s28, %s31
      %p37 = scmp.eq.s32.totalorder %s18, 0
      %p38 = por %p36, %p37
      %p39 = scmp.ne.s32.totalorder %s28, %s31
      %p40 = scmp.eq.s32.totalorder %s23, 1
      %p41 = por %p39, %p40
      %p42 = scmp.ne.s32.totalorder %s31, %s32
      %p43 = scmp.eq.s32.totalorder %s23, 0
      %p44 = por %p42, %p43
      %p45 = scmp.ne.s32.totalorder %s31, %s32
      %p46 = scmp.eq.s32.totalorder %s24, 1
      %p47 = por %p45, %p46
      %p49 = scmp.ne.s32.totalorder %s32, %s48
      %p50 = scmp.eq.s32.totalorder %s24, 0
      %p51 = por %p49, %p50
      %s52 = ssub.s32 %s18, %s25
      %p53 = scmp.eq.s32.totalorder %s52, 0
      %s55 = sadd.s32 %s54, 1
      %s56 = scalar_select %p53, %s54, %s55
      %p59 = pneg %p53
      %p60 = scmp.eq.s32.totalorder %s18, 1
      %p61 = por %p59, %p60
      %p62 = scmp.ne.s32.totalorder %s54, %s57
      %p63 = scmp.eq.s32.totalorder %s18, 0
      %p64 = por %p62, %p63
      %p65 = scmp.ne.s32.totalorder %s54, %s57
      %p66 = scmp.eq.s32.totalorder %s23, 1
      %p67 = por %p65, %p66
      %p68 = scmp.ne.s32.totalorder %s57, %s58
      %p69 = scmp.eq.s32.totalorder %s23, 0
      %p70 = por %p68, %p69
      %p71 = scmp.ne.s32.totalorder %s57, %s58
      %p72 = scmp.eq.s32.totalorder %s24, 1
      %p73 = por %p71, %p72
      %p75 = scmp.ne.s32.totalorder %s58, %s74
      %p76 = scmp.eq.s32.totalorder %s24, 0
      %p77 = por %p75, %p76
      %s78 = ssub.s32 %s18, %s25
      %p79 = scmp.eq.s32.totalorder %s78, 0
      %s81 = sadd.s32 %s80, 1
      %s82 = scalar_select %p79, %s80, %s81
      %p85 = pneg %p79
      %p86 = scmp.eq.s32.totalorder %s18, 1
      %p87 = por %p85, %p86
      %p88 = scmp.ne.s32.totalorder %s80, %s83
      %p89 = scmp.eq.s32.totalorder %s18, 0
      %p90 = por %p88, %p89
      %p91 = scmp.ne.s32.totalorder %s80, %s83
      %p92 = scmp.eq.s32.totalorder %s23, 1
      %p93 = por %p91, %p92
      %p94 = scmp.ne.s32.totalorder %s83, %s84
      %p95 = scmp.eq.s32.totalorder %s23, 0
      %p96 = por %p94, %p95
      %p97 = scmp.ne.s32.totalorder %s83, %s84
      %p98 = scmp.eq.s32.totalorder %s24, 1
      %p99 = por %p97, %p98
      %p101 = scmp.ne.s32.totalorder %s84, %s100
      %p102 = scmp.eq.s32.totalorder %s24, 0
      %p103 = por %p101, %p102
      %p104 = scmp.le.s32.totalorder 1, %s18
      %p105 = scmp.lt.s32.totalorder %s18, 3
      %p106 = pnand %p104, %p105
      %p107 = pneg %p106
      // Predicated region
      $region9: #{tpu_custom_call.1} parent=5 // pred_check
        _
      $region10: #{tpu_custom_call.1} parent=5 // pred_check_branch
        %109 = sbr.rel (%p106) target = $region12
      $region11: #{tpu_custom_call.1} parent=5 // pred_region
        %s110 = ssub.s32 %s18, 1
      $region12: #{tpu_custom_call.1} parent=5 // pred_fallthru
        _
      %p111 = scmp.lt.s32.totalorder %s18, 2
      // Predicated region
      $region13: #{tpu_custom_call.1} parent=5 // pred_check
        %p112 = pneg %p111
      $region14: #{tpu_custom_call.1} parent=5 // pred_check_branch
        %114 = sbr.rel (%p112) target = $region16
      $region15: #{tpu_custom_call.1} parent=5 // pred_region
        // Predicated region
        $region17: #{tpu_custom_call.1} parent=15 // pred_check
          %p115 = pneg %p38
        $region18: #{tpu_custom_call.1} parent=15 // pred_check_branch
          %117 = sbr.rel (%p115) target = $region20
        $region19: #{tpu_custom_call.1} parent=15 // pred_region
          %s118 = smul.u32 2, %s18
          %p119 = scmp.lt.s32.totalorder %s118, 3
          %s120 = scalar_select %p119, %s118, 3
          %s121 = smul.addr %s120, 4
          %s122 = scalar_lea.vmem %s1, %s121
          %s123 = smul.u32 2, %s18
        $region20: #{tpu_custom_call.1} parent=15 // pred_fallthru
          _
        // Predicated region
        $region21: #{tpu_custom_call.1} parent=15 // pred_check
          %p124 = pneg %p64
        $region22: #{tpu_custom_call.1} parent=15 // pred_check_branch
          %126 = sbr.rel (%p124) target = $region24
        $region23: #{tpu_custom_call.1} parent=15 // pred_region
          %s127 = smul.u32 2, %s18
          %p128 = scmp.lt.s32.totalorder %s127, 3
          %s129 = scalar_select %p128, %s127, 3
          %s130 = smul.addr %s129, 4
          %s131 = scalar_lea.vmem %s2, %s130
          %s132 = smul.u32 2, %s18
        $region24: #{tpu_custom_call.1} parent=15 // pred_fallthru
          _
      $region16: #{tpu_custom_call.1} parent=5 // pred_fallthru
        _
      %p133 = scmp.le.s32.totalorder 1, %s18
      %p134 = scmp.lt.s32.totalorder %s18, 3
      %p135 = pnand %p133, %p134
      %p136 = pneg %p135
      // Predicated region
      $region25: #{tpu_custom_call.1} parent=5 // pred_check
        _
      $region26: #{tpu_custom_call.1} parent=5 // pred_check_branch
        %138 = sbr.rel (%p135) target = $region28
      $region27: #{tpu_custom_call.1} parent=5 // pred_region
        %s139 = ssub.s32 %s18, 1
        %s140 = smul.u32 2, %s23
        %p141 = scmp.lt.s32.totalorder %s140, 3
        %s142 = scalar_select %p141, %s140, 3
        %s143 = smul.addr %s142, 4
        %s144 = scalar_lea.vmem %s1, %s143
        %p145 = pneg %p44
        %p146 = pneg %p41
        %s147 = smul.u32 2, %s23
        %p148 = scmp.lt.s32.totalorder %s147, 3
        %s149 = scalar_select %p148, %s147, 3
        %s150 = smul.addr %s149, 4
        %s151 = scalar_lea.vmem %s2, %s150
        %p152 = pneg %p70
        %p153 = pneg %p67
        %p154 = pneg %p96
        %p155 = pneg %p93
        %s156 = sand.u32 %s83, 1
        %s157 = scalar_lea.sflag [#allocation9], %s156
        %s158 = sand.u32 %s83, 1
        %s159 = smul.addr %s158, 2
        %s160 = scalar_lea.vmem [#allocation8], %s159
        %s161 = smul.u32 2, %s23
        %p162 = scmp.lt.s32.totalorder %s161, 3
        %s163 = scalar_select %p162, %s161, 3
        %s164 = smul.addr %s163, 4
        %s165 = scalar_lea.vmem %s1, %s164
        %s166 = smul.u32 2, %s23
        %s167 = smul.u32 2, %s23
        %p168 = scmp.lt.s32.totalorder %s167, 3
        %s169 = scalar_select %p168, %s167, 3
        %s170 = smul.addr %s169, 4
        %s171 = scalar_lea.vmem %s2, %s170
        %s172 = smul.u32 2, %s23
        %s173 = smul.u32 %s23, 2
        %v174 = vlaneseq
        %v175 = vshrl.u32 %v174, 7
        loop: start=0, step=1, limit=2
        $region29: #{tpu_custom_call.1} parent=27 // loop_pre_header
          _
        $region30: #{tpu_custom_call.1} parent=27 // loop_header
          %s177 = sphi 0, %s181
          %p178 = scmp.ge.s32.totalorder %s177, 2
          %v182 = vphi 0.0, %v467
        $region31: #{tpu_custom_call.1} parent=27 // loop_header_branch
          %180 = sbr.rel (%p178) target = $region35
        $region32: #{tpu_custom_call.1} parent=27 // loop_body
          %s183 = sadd.s32 %s173, %s177
          %s184 = sld [smem:[#allocation7 + %s183]]
          %p185 = scmp.ne.s32.totalorder %s184, 0
          %p186 = scmp.eq.s32.totalorder %s184, 0
          // Predicated region
          $region36: #{tpu_custom_call.1} parent=32 // pred_check
            %p187 = pneg %p186
          $region37: #{tpu_custom_call.1} parent=32 // pred_check_branch
            %189 = sbr.rel (%p187) target = $region39
          $region38: #{tpu_custom_call.1} parent=32 // pred_region
            %s190 = smul.u32 %s177, 4
            %s191 = scalar_lea.vmem %s165, %s190
            %v192 = vld [vmem:[%s191] sm:$0x7]
            %s193 = scalar_lea.vmem %s171, %s190
            %v194 = vld [vmem:[%s193] sm:$0x7]
            %v195 = vsub.f32 %v192, %v194
            %v196 = vmul.f32 %v195, %v195
            %v198 = vrot.slane %v196, 1
            %v200 = vadd.f32 %v196, %v198
            %v201 = vrot.slane %v196, 2
            %v203 = vadd.f32 %v200, %v201
            %v204 = vrsqrt.pop %v203
            %v205 = vmul.f32 %v203, %v204
            %vm206 = vcmp.eq.f32.partialorder %v203, inf
            %v207 = vsel %vm206, %v203, %v205
            %vm208 = vcmp.eq.f32.partialorder %v203, 0.0
            %v209 = vand.u32 %v203, 2147483648
            %v210 = vsel %vm208, %v209, %v207
            %vm211 = vcmask 1040384
            %v212 = vsel %vm211, %v210, 0.0
            %213 = vadd.xlane.f32.xlu0 %v212
            %v214 = vpop.xlane.xlu0 %213
            %v215 = vrot.slane %v214, 4
            %v216 = vadd.f32 %v214, %v215
            %v217 = vrot.slane %v216, 2
            %v218 = vadd.f32 %v216, %v217
            %v219 = vrot.slane %v218, 1
            %v220 = vadd.f32 %v218, %v219
            %s221 = vtos %v220
            %s222 = smul.f32 %s221, 0.0078125
            %v223 = vstv %s222
            %224 = vst [vmem:[#allocation5] sm:$0x1] %v223
          $region39: #{tpu_custom_call.1} parent=32 // pred_fallthru
            _
          // Predicated region
          $region40: #{tpu_custom_call.1} parent=32 // pred_check
            %p225 = pneg %p185
          $region41: #{tpu_custom_call.1} parent=32 // pred_check_branch
            %227 = sbr.rel (%p225) target = $region43
          $region42: #{tpu_custom_call.1} parent=32 // pred_region
            %s228 = smul.u32 %s177, 4
            %s229 = scalar_lea.vmem %s165, %s228
            %v230 = vld [vmem:[%s229] sm:$0x7]
            %231 = vst [vmem:[#allocation2] sm:$0x7] %v230
            %v232 = vld [vmem:[#allocation2] sm:$0xff]
            %233 = vxpose.xlu0.b32.start [1/16] %v232, 128
            %234 = vxpose.xlu0.b32.cont [2/16] 0.0, 128
            %235 = vxpose.xlu0.b32.cont [3/16] 0.0, 128
            %236 = vxpose.xlu0.b32.cont [4/16] 0.0, 128
            %237 = vxpose.xlu0.b32.cont [5/16] 0.0, 128
            %238 = vxpose.xlu0.b32.cont [6/16] 0.0, 128
            %239 = vxpose.xlu0.b32.cont [7/16] 0.0, 128
            %240 = vxpose.xlu0.b32.cont [8/16] 0.0, 128
            %241 = vxpose.xlu0.b32.cont [9/16] 0.0, 128
            %242 = vxpose.xlu0.b32.cont [10/16] 0.0, 128
            %243 = vxpose.xlu0.b32.cont [11/16] 0.0, 128
            %244 = vxpose.xlu0.b32.cont [12/16] 0.0, 128
            %245 = vxpose.xlu0.b32.cont [13/16] 0.0, 128
            %246 = vxpose.xlu0.b32.cont [14/16] 0.0, 128
            %247 = vxpose.xlu0.b32.cont [15/16] 0.0, 128
            %248 = vxpose.xlu0.b32.end [16/16] 0.0, 128
            %v249 = vpop.trf.xlu0
            %v250 = vpop.trf.xlu0
            %v251 = vpop.trf.xlu0
            %v252 = vpop.trf.xlu0
            %v253 = vpop.trf.xlu0
            %v254 = vpop.trf.xlu0
            %v255 = vpop.trf.xlu0
            %v256 = vpop.trf.xlu0
            %v257 = vpop.trf.xlu0
            %v258 = vpop.trf.xlu0
            %v259 = vpop.trf.xlu0
            %v260 = vpop.trf.xlu0
            %v261 = vpop.trf.xlu0
            %v262 = vpop.trf.xlu0
            %v263 = vpop.trf.xlu0
            %v264 = vpop.trf.xlu0
            %vm265 = vcmask 64512
            %266 = vst.msk [vmem:[#allocation3] sm:$0xff] %vm265, %v249
            %267 = vst.msk [vmem:[#allocation3 + $0x8] sm:$0xff] %vm265, %v250
            %268 = vst.msk [vmem:[#allocation3 + $0x10] sm:$0xff] %vm265, %v251
            %269 = vst.msk [vmem:[#allocation3 + $0x18] sm:$0xff] %vm265, %v252
            %270 = vst.msk [vmem:[#allocation3 + $0x20] sm:$0xff] %vm265, %v253
            %271 = vst.msk [vmem:[#allocation3 + $0x28] sm:$0xff] %vm265, %v254
            %272 = vst.msk [vmem:[#allocation3 + $0x30] sm:$0xff] %vm265, %v255
            %273 = vst.msk [vmem:[#allocation3 + $0x38] sm:$0xff] %vm265, %v256
            %274 = vst.msk [vmem:[#allocation3 + $0x40] sm:$0xff] %vm265, %v257
            %275 = vst.msk [vmem:[#allocation3 + $0x48] sm:$0xff] %vm265, %v258
            %276 = vst.msk [vmem:[#allocation3 + $0x50] sm:$0xff] %vm265, %v259
            %277 = vst.msk [vmem:[#allocation3 + $0x58] sm:$0xff] %vm265, %v260
            %278 = vst.msk [vmem:[#allocation3 + $0x60] sm:$0xff] %vm265, %v261
            %279 = vst.msk [vmem:[#allocation3 + $0x68] sm:$0xff] %vm265, %v262
            %280 = vst.msk [vmem:[#allocation3 + $0x70] sm:$0xff] %vm265, %v263
            %281 = vst.msk [vmem:[#allocation3 + $0x78] sm:$0xff] %vm265, %v264
            %s282 = scalar_lea.vmem %s171, %s228
            %v283 = vld [vmem:[%s282] sm:$0x7]
            %284 = vst [vmem:[#allocation4] sm:$0x7] %v283
            loop: start=0, step=1, limit=4
            $region44: #{tpu_custom_call.1} parent=42 // loop_pre_header
              _
            $region45: #{tpu_custom_call.1} parent=42 // loop_header
              %s286 = sphi 0, %s290
              %p287 = scmp.ge.s32.totalorder %s286, 4
              %s291 = sphi 0.0, %s454
            $region46: #{tpu_custom_call.1} parent=42 // loop_header_branch
              %289 = sbr.rel (%p287) target = $region50
            $region47: #{tpu_custom_call.1} parent=42 // loop_body
              %s292 = smul.u32 %s286, 32
              %s293 = scalar_lea.vmem [#allocation3], %s292
              %v294 = vld [vmem:[%s293] sm:$0xff]
              %v295 = vld [vmem:[%s293 + $0x8] sm:$0xff]
              %v296 = vld [vmem:[%s293 + $0x10] sm:$0xff]
              %v297 = vld [vmem:[%s293 + $0x18] sm:$0xff]
              %299 = vset.pattern.permute.xlu0 0
              %300 = vperm.xlu0 %299, %v294
              %v301 = vpop.permute.xlu0 %300
              %304 = vset.pattern.permute.xlu0 0
              %305 = vperm.xlu0 %304, %v295
              %v306 = vpop.permute.xlu0 %305
              %309 = vset.pattern.permute.xlu0 0
              %310 = vperm.xlu0 %309, %v296
              %v311 = vpop.permute.xlu0 %310
              %314 = vset.pattern.permute.xlu0 0
              %315 = vperm.xlu0 %314, %v297
              %v316 = vpop.permute.xlu0 %315
              %318 = vset.pattern.permute.xlu0 1
              %319 = vperm.xlu0 %318, %v294
              %v320 = vpop.permute.xlu0 %319
              %322 = vset.pattern.permute.xlu0 1
              %323 = vperm.xlu0 %322, %v295
              %v324 = vpop.permute.xlu0 %323
              %326 = vset.pattern.permute.xlu0 1
              %327 = vperm.xlu0 %326, %v296
              %v328 = vpop.permute.xlu0 %327
              %330 = vset.pattern.permute.xlu0 1
              %331 = vperm.xlu0 %330, %v297
              %v332 = vpop.permute.xlu0 %331
              %334 = vset.pattern.permute.xlu0 2
              %335 = vperm.xlu0 %334, %v294
              %v336 = vpop.permute.xlu0 %335
              %338 = vset.pattern.permute.xlu0 2
              %339 = vperm.xlu0 %338, %v295
              %v340 = vpop.permute.xlu0 %339
              %342 = vset.pattern.permute.xlu0 2
              %343 = vperm.xlu0 %342, %v296
              %v344 = vpop.permute.xlu0 %343
              %346 = vset.pattern.permute.xlu0 2
              %347 = vperm.xlu0 %346, %v297
              %v348 = vpop.permute.xlu0 %347
              %v350 = vld [vmem:[#allocation4] sm:$0x1]
              %v351 = vld [vmem:[#allocation4 + $0x1] sm:$0x1]
              %v352 = vld [vmem:[#allocation4 + $0x2] sm:$0x1]
              %v353 = vlaneseq
              %v354 = vshrl.u32 %v353, 7
              %v355 = vsub.s32 0, %v354
              %v356 = vrot.slane %v350, %v355
              %v357 = vsub.f32 %v301, %v356
              %v358 = vsub.f32 %v306, %v356
              %v359 = vsub.f32 %v311, %v356
              %v360 = vsub.f32 %v316, %v356
              %v361 = vmul.f32 %v357, %v357
              %v362 = vmul.f32 %v358, %v358
              %v363 = vmul.f32 %v359, %v359
              %v364 = vmul.f32 %v360, %v360
              %v365 = vlaneseq
              %v366 = vshrl.u32 %v365, 7
              %v367 = vsub.s32 0, %v366
              %v368 = vrot.slane %v351, %v367
              %v369 = vsub.f32 %v320, %v368
              %v370 = vsub.f32 %v324, %v368
              %v371 = vsub.f32 %v328, %v368
              %v372 = vsub.f32 %v332, %v368
              %v373 = vmul.f32 %v369, %v369
              %v374 = vmul.f32 %v370, %v370
              %v375 = vmul.f32 %v371, %v371
              %v376 = vmul.f32 %v372, %v372
              %v377 = vadd.f32 %v361, %v373
              %v378 = vadd.f32 %v362, %v374
              %v379 = vadd.f32 %v363, %v375
              %v380 = vadd.f32 %v364, %v376
              %v381 = vlaneseq
              %v382 = vshrl.u32 %v381, 7
              %v383 = vsub.s32 0, %v382
              %v384 = vrot.slane %v352, %v383
              %v385 = vsub.f32 %v336, %v384
              %v386 = vsub.f32 %v340, %v384
              %v387 = vsub.f32 %v344, %v384
              %v388 = vsub.f32 %v348, %v384
              %v389 = vmul.f32 %v385, %v385
              %v390 = vmul.f32 %v386, %v386
              %v391 = vmul.f32 %v387, %v387
              %v392 = vmul.f32 %v388, %v388
              %v393 = vadd.f32 %v377, %v389
              %v394 = vadd.f32 %v378, %v390
              %v395 = vadd.f32 %v379, %v391
              %v396 = vadd.f32 %v380, %v392
              %397 = vmin.xlane.f32.xlu0 %v393
              %v398 = vpop.xlane.xlu0 %397
              %399 = vmin.xlane.f32.xlu0 %v394
              %v400 = vpop.xlane.xlu0 %399
              %401 = vmin.xlane.f32.xlu0 %v395
              %v402 = vpop.xlane.xlu0 %401
              %403 = vmin.xlane.f32.xlu0 %v396
              %v404 = vpop.xlane.xlu0 %403
              %v405 = vmax.f32 %v398, 0.0
              %v406 = vmax.f32 %v400, 0.0
              %v407 = vmax.f32 %v402, 0.0
              %v408 = vmax.f32 %v404, 0.0
              %v409 = vrsqrt.pop %v405
              %v410 = vmul.f32 %v405, %v409
              %vm411 = vcmp.eq.f32.partialorder %v405, inf
              %v412 = vsel %vm411, %v405, %v410
              %vm413 = vcmp.eq.f32.partialorder %v405, 0.0
              %v414 = vand.u32 %v405, 2147483648
              %v415 = vsel %vm413, %v414, %v412
              %v416 = vrsqrt.pop %v406
              %v417 = vmul.f32 %v406, %v416
              %vm418 = vcmp.eq.f32.partialorder %v406, inf
              %v419 = vsel %vm418, %v406, %v417
              %vm420 = vcmp.eq.f32.partialorder %v406, 0.0
              %v421 = vand.u32 %v406, 2147483648
              %v422 = vsel %vm420, %v421, %v419
              %v423 = vrsqrt.pop %v407
              %v424 = vmul.f32 %v407, %v423
              %vm425 = vcmp.eq.f32.partialorder %v407, inf
              %v426 = vsel %vm425, %v407, %v424
              %vm427 = vcmp.eq.f32.partialorder %v407, 0.0
              %v428 = vand.u32 %v407, 2147483648
              %v429 = vsel %vm427, %v428, %v426
              %v430 = vrsqrt.pop %v408
              %v431 = vmul.f32 %v408, %v430
              %vm432 = vcmp.eq.f32.partialorder %v408, inf
              %v433 = vsel %vm432, %v408, %v431
              %vm434 = vcmp.eq.f32.partialorder %v408, 0.0
              %v435 = vand.u32 %v408, 2147483648
              %v436 = vsel %vm434, %v435, %v433
              %vm437 = vcmask 7168
              %v438 = vsel %vm437, %v415, 0.0
              %v439 = vsel %vm437, %v422, 0.0
              %v440 = vadd.f32 %v438, %v439
              %v441 = vsel %vm437, %v429, 0.0
              %v442 = vadd.f32 %v440, %v441
              %v443 = vsel %vm437, %v436, 0.0
              %v444 = vadd.f32 %v442, %v443
              %445 = vadd.xlane.f32.xlu0 %v444
              %v446 = vpop.xlane.xlu0 %445
              %v447 = vrot.slane %v446, 4
              %v448 = vadd.f32 %v446, %v447
              %v449 = vrot.slane %v448, 2
              %v450 = vadd.f32 %v448, %v449
              %v451 = vrot.slane %v450, 1
              %v452 = vadd.f32 %v450, %v451
              %s453 = vtos %v452
              %s454 = sadd.f32 %s291, %s453
            $region48: #{tpu_custom_call.1} parent=42 // loop_footer
              %s290 = sadd.s32 1, %s286
            $region49: #{tpu_custom_call.1} parent=42 // loop_footer_branch
              %285 = sbr.rel target = $region45
            $region50: #{tpu_custom_call.1} parent=42 // loop_exit
              _
            %s455 = smul.f32 %s291, 0.0078125
            %v456 = vstv %s455
            %457 = vst [vmem:[#allocation5] sm:$0x1] %v456
          $region43: #{tpu_custom_call.1} parent=32 // pred_fallthru
            _
          %v458 = vld [vmem:[#allocation5] sm:$0x1]
          %v459 = vstv %s177
          %vm460 = vcmp.eq.s32.totalorder %v175, %v459
          %v462 = vlaneseq
          %v463 = vshrl.u32 %v462, 7
          %v464 = vsub.s32 0, %v463
          %v465 = vrot.slane %v458, %v464
          %v467 = vsel %vm460, %v465, %v182
        $region33: #{tpu_custom_call.1} parent=27 // loop_footer
          %s181 = sadd.s32 1, %s177
        $region34: #{tpu_custom_call.1} parent=27 // loop_footer_branch
          %176 = sbr.rel target = $region30
        $region35: #{tpu_custom_call.1} parent=27 // loop_exit
          _
        %468 = vst [vmem:[%s160] sm:$0x3] %v182
        %s469 = sand.u32 %s83, 1
        %s470 = scalar_lea.sflag [#allocation9], %s469
        %s471 = sand.u32 %s83, 1
        %s472 = smul.addr %s471, 2
        %s473 = scalar_lea.vmem [#allocation8], %s472
        // Predicated region
        $region51: #{tpu_custom_call.1} parent=27 // pred_check
          %p474 = pneg %p93
        $region52: #{tpu_custom_call.1} parent=27 // pred_check_branch
          %476 = sbr.rel (%p474) target = $region54
        $region53: #{tpu_custom_call.1} parent=27 // pred_region
          %s478 = ssub.s32 32, 32
          %479 = vsyncadd %s470, %s478
          %s480 = smul.addr %s23, 32
          %s481 = scalar_lea.hbm %s3, %s480
          %s483 = sshll.u32 %s473, 4
          %s484 = int_to_ptr.vmem [resolvable:$true] %s483
          %486 = dma.vmem_to_hbm [thread:$0]  %s484, 32, %s481, %s470
        $region54: #{tpu_custom_call.1} parent=27 // pred_fallthru
          _
      $region28: #{tpu_custom_call.1} parent=5 // pred_fallthru
        _
      %p487 = scmp.le.s32.totalorder 2, %s18
      // Predicated region
      $region55: #{tpu_custom_call.1} parent=5 // pred_check
        %p488 = pneg %p487
      $region56: #{tpu_custom_call.1} parent=5 // pred_check_branch
        %490 = sbr.rel (%p488) target = $region58
      $region57: #{tpu_custom_call.1} parent=5 // pred_region
        %s491 = ssub.s32 %s18, 2
        // Predicated region
        $region59: #{tpu_custom_call.1} parent=57 // pred_check
          %p492 = pneg %p99
        $region60: #{tpu_custom_call.1} parent=57 // pred_check_branch
          %494 = sbr.rel (%p492) target = $region62
        $region61: #{tpu_custom_call.1} parent=57 // pred_region
          %s495 = sand.u32 %s84, 1
          %s496 = scalar_lea.sflag [#allocation9], %s495
          %s497 = sand.u32 %s84, 1
          %s498 = smul.addr %s497, 2
          %s499 = scalar_lea.vmem [#allocation8], %s498
          %500 = dma.done %s496, 32
        $region62: #{tpu_custom_call.1} parent=57 // pred_fallthru
          _
      $region58: #{tpu_custom_call.1} parent=5 // pred_fallthru
        _
    $region6: #{tpu_custom_call.1} parent=1 // loop_footer
      %s22 = sadd.s32 1, %s18
    $region7: #{tpu_custom_call.1} parent=1 // loop_footer_branch
      %17 = sbr.rel target = $region3
    $region8: #{tpu_custom_call.1} parent=1 // loop_exit
      _
    %501 = vsyncpa [#allocation9], 1
    %s502 = scalar_lea.sflag [#allocation9], 1
    %503 = vsyncpa %s502, 1

</llo_original>
